<compile_context>
chip_gen: v6e
topology: v6e:2x2x1
jax: 0.10.0
libtpu: 0.0.40
codegen_flags: <defaults>
</compile_context>

<pallas_src>
import jax
import jax.numpy as jnp
from jax.experimental import pallas as pl
from jax.experimental.pallas import tpu as pltpu

EPS = 1e-5
NEG_SLOPE = 0.2
LANE = 128  # lane-pad every feature dimension to this width


# ----------------------------------------------------------------------------
# Kernel
# ----------------------------------------------------------------------------
def _bn_lrelu_fused(h, gamma, beta):
    """Training-mode BatchNorm1d fused into one scale/shift, then LeakyReLU."""
    mean = jnp.mean(h, axis=0, keepdims=True)          # (1, F)
    d = h - mean
    var = jnp.mean(d * d, axis=0, keepdims=True)       # biased variance, (1, F)
    s = gamma * jax.lax.rsqrt(var + EPS)                # (1, F) scale
    t = beta - mean * s                                 # (1, F) shift
    y = h * s + t                                       # 2 VALU ops / element
    return jnp.where(y > 0, y, NEG_SLOPE * y)


def decoder_kernel(z_ref, p_ref, out_ref):
    z = z_ref[...]                                      # (B, 128), latent lanes zero-padded

    # Static, sublane-aligned views into the single packed parameter slab.
    w1 = p_ref[0:LANE, :]                               # (128, 128)
    w2 = p_ref[LANE:2 * LANE, :]                        # (128, 128)
    w3 = p_ref[2 * LANE:3 * LANE, :]                    # (128, 128)
    vecs = p_ref[3 * LANE:3 * LANE + 8, :]              # one aligned (8, 128) load
    g1, be1 = vecs[0:1, :], vecs[1:2, :]
    g2, be2 = vecs[2:3, :], vecs[3:4, :]
    b3 = vecs[4:5, :]

    # Layer 1/2: Linear (bias dropped -- absorbed by BN mean) -> fused BN -> LeakyReLU
    h1 = _bn_lrelu_fused(
        jnp.dot(z, w1, preferred_element_type=jnp.float32), g1, be1)
    h2 = _bn_lrelu_fused(
        jnp.dot(h1, w2, preferred_element_type=jnp.float32), g2, be2)

    # Output layer: Linear (+bias) -> sigmoid, written to a lane-dense (B,128) slab.
    h3 = jnp.dot(h2, w3, preferred_element_type=jnp.float32) + b3
    out_ref[...] = jax.nn.sigmoid(h3).astype(out_ref.dtype)


# ----------------------------------------------------------------------------
# Host-side packing / wrapper
# ----------------------------------------------------------------------------
def pack_params(params, latent_dim, hidden_dims, output_dim):
    """Pack all kernel-visible parameters into one lane-dense (392,128) slab.

    Rows 0:128   -> w1 (zero-padded),  128:256 -> w2,  256:384 -> w3
    Rows 384:392 -> [g1, be1, g2, be2, b3, 0, 0, 0]
    b1/b2 are intentionally omitted: a bias feeding straight into training-mode
    BatchNorm is cancelled exactly by the batch mean.
    """
    h1, h2 = hidden_dims
    assert latent_dim <= LANE and h1 <= LANE and h2 <= LANE and output_dim <= LANE

    pack = jnp.zeros((3 * LANE + 8, LANE), jnp.float32)
    pack = pack.at[0:latent_dim, 0:h1].set(params["w1"])
    pack = pack.at[LANE:LANE + h1, 0:h2].set(params["w2"])
    pack = pack.at[2 * LANE:2 * LANE + h2, 0:output_dim].set(params["w3"])
    base = 3 * LANE
    pack = pack.at[base + 0, 0:h1].set(params["g1"][0])
    pack = pack.at[base + 1, 0:h1].set(params["be1"][0])
    pack = pack.at[base + 2, 0:h2].set(params["g2"][0])
    pack = pack.at[base + 3, 0:h2].set(params["be2"][0])
    pack = pack.at[base + 4, 0:output_dim].set(params["b3"][0])
    return pack


def decoder_forward(z, packed_params, output_dim):
    """z: (B, latent_dim) f32. packed_params: (392,128) slab from pack_params."""
    B, latent_dim = z.shape
    z_pad = jnp.pad(z, ((0, 0), (0, LANE - latent_dim))) if latent_dim < LANE else z

    vmem_full = pl.BlockSpec(memory_space=pltpu.MemorySpace.VMEM)
    out_padded = pl.pallas_call(
        decoder_kernel,
        out_shape=jax.ShapeDtypeStruct((B, LANE), jnp.float32),
        in_specs=[vmem_full, vmem_full],
        out_specs=vmem_full,
    )(z_pad, packed_params)
    return out_padded[:, :output_dim]


# ----------------------------------------------------------------------------
# Params + pure-JAX reference (matches PyTorch training-mode forward, WITH
# the b1/b2 biases -- validating that dropping them in the kernel is exact).
# ----------------------------------------------------------------------------
def init_params(key, latent_dim=20, hidden_dims=(50, 100), output_dim=64):
    dims = (latent_dim,) + tuple(hidden_dims) + (output_dim,)
    keys = jax.random.split(key, 8)
    p = {}
    for idx, (din, dout) in enumerate(zip(dims[:-1], dims[1:]), start=1):
        bound = 1.0 / jnp.sqrt(jnp.float32(din))
        p[f"w{idx}"] = jax.random.uniform(
            keys[2 * idx - 2], (din, dout), jnp.float32, -bound, bound)
        p[f"b{idx}"] = jax.random.uniform(
            keys[2 * idx - 1], (1, dout), jnp.float32, -bound, bound)
    p["g1"] = jnp.ones((1, hidden_dims[0]), jnp.float32)
    p["be1"] = jnp.zeros((1, hidden_dims[0]), jnp.float32)
    p["g2"] = jnp.ones((1, hidden_dims[1]), jnp.float32)
    p["be2"] = jnp.zeros((1, hidden_dims[1]), jnp.float32)
    return p


def _bn_ref(h, gamma, beta):
    mean = jnp.mean(h, axis=0, keepdims=True)
    var = jnp.mean((h - mean) * (h - mean), axis=0, keepdims=True)
    return (h - mean) * jax.lax.rsqrt(var + EPS) * gamma + beta


def _leaky_relu(x):
    return jnp.where(x > 0, x, NEG_SLOPE * x)


def decoder_reference(z, params):
    h = z @ params["w1"] + params["b1"]
    h = _leaky_relu(_bn_ref(h, params["g1"], params["be1"]))
    h = h @ params["w2"] + params["b2"]
    h = _leaky_relu(_bn_ref(h, params["g2"], params["be2"]))
    h = h @ params["w3"] + params["b3"]
    return jax.nn.sigmoid(h)


if __name__ == "__main__":
    B, LATENT, OUT = 8, 20, 64
    HIDDEN = (50, 100)
    key = jax.random.PRNGKey(0)
    k_z, k_p = jax.random.split(key)

    z = jax.random.normal(k_z, (B, LATENT), jnp.float32)
    params = init_params(k_p, latent_dim=LATENT, hidden_dims=HIDDEN,
                         output_dim=OUT)
    packed = pack_params(params, LATENT, HIDDEN, OUT)

    out = decoder_forward(z, packed, OUT)
    out = jax.block_until_ready(out)

    ref = decoder_reference(z, params)
    assert out.shape == (B, OUT)
    assert jnp.allclose(out, ref, atol=2e-5, rtol=2e-5)

    print("KERNEL_OK")
</pallas_src>

<mosaic_0001>
module attributes {stable_mosaic.version = 11 : i64} {
  func.func @decoder_kernel(%arg0: memref<8x128xf32, #tpu.memory_space<vmem>>, %arg1: memref<392x128xf32, #tpu.memory_space<vmem>>, %arg2: memref<8x128xf32, #tpu.memory_space<vmem>>) attributes {dimension_semantics = [], scalar_prefetch = 0 : i64, scratch_operands = 0 : i64, tpu.core_type = #tpu.core_type<tc>} {
    %c0 = arith.constant 0 : index
    %c0_0 = arith.constant 0 : index
    %0 = vector.load %arg0[%c0, %c0_0] : memref<8x128xf32, #tpu.memory_space<vmem>>, vector<8x128xf32>
    %c0_1 = arith.constant 0 : index
    %c0_2 = arith.constant 0 : index
    %1 = vector.load %arg1[%c0_1, %c0_2] : memref<392x128xf32, #tpu.memory_space<vmem>>, vector<128x128xf32>
    %c128 = arith.constant 128 : index
    %c0_3 = arith.constant 0 : index
    %2 = vector.load %arg1[%c128, %c0_3] : memref<392x128xf32, #tpu.memory_space<vmem>>, vector<128x128xf32>
    %c256 = arith.constant 256 : index
    %c0_4 = arith.constant 0 : index
    %3 = vector.load %arg1[%c256, %c0_4] : memref<392x128xf32, #tpu.memory_space<vmem>>, vector<128x128xf32>
    %c384 = arith.constant 384 : index
    %c0_5 = arith.constant 0 : index
    %4 = vector.load %arg1[%c384, %c0_5] : memref<392x128xf32, #tpu.memory_space<vmem>>, vector<8x128xf32>
    %5 = vector.extract_strided_slice %4 {offsets = [0, 0], sizes = [1, 128], strides = [1, 1]} : vector<8x128xf32> to vector<1x128xf32>
    %6 = vector.extract_strided_slice %4 {offsets = [1, 0], sizes = [1, 128], strides = [1, 1]} : vector<8x128xf32> to vector<1x128xf32>
    %7 = vector.extract_strided_slice %4 {offsets = [2, 0], sizes = [1, 128], strides = [1, 1]} : vector<8x128xf32> to vector<1x128xf32>
    %8 = vector.extract_strided_slice %4 {offsets = [3, 0], sizes = [1, 128], strides = [1, 1]} : vector<8x128xf32> to vector<1x128xf32>
    %9 = vector.extract_strided_slice %4 {offsets = [4, 0], sizes = [1, 128], strides = [1, 1]} : vector<8x128xf32> to vector<1x128xf32>
    %cst = arith.constant dense<0.000000e+00> : vector<8x128xf32>
    %10 = tpu.matmul %0, %1, %cst {dimension_numbers = #tpu.dot_dimension_numbers<[1], [0], [0], [1], [0, 0, 1, 1], [], []>} : vector<8x128xf32>, vector<128x128xf32>, vector<8x128xf32> -> vector<8x128xf32>
    %cst_6 = arith.constant dense<0.000000e+00> : vector<128xf32>
    %11 = vector.multi_reduction <add>, %10, %cst_6 [0] : vector<8x128xf32> to vector<128xf32>
    %12 = vector.shape_cast %11 : vector<128xf32> to vector<1x128xf32>
    %cst_7 = arith.constant 8.000000e+00 : f32
    %13 = vector.broadcast %cst_7 : f32 to vector<1x128xf32>
    %14 = arith.divf %12, %13 : vector<1x128xf32>
    %15 = vector.broadcast %14 : vector<1x128xf32> to vector<8x128xf32>
    %16 = arith.subf %10, %15 : vector<8x128xf32>
    %17 = arith.mulf %16, %16 : vector<8x128xf32>
    %cst_8 = arith.constant dense<0.000000e+00> : vector<128xf32>
    %18 = vector.multi_reduction <add>, %17, %cst_8 [0] : vector<8x128xf32> to vector<128xf32>
    %19 = vector.shape_cast %18 : vector<128xf32> to vector<1x128xf32>
    %cst_9 = arith.constant 8.000000e+00 : f32
    %20 = vector.broadcast %cst_9 : f32 to vector<1x128xf32>
    %21 = arith.divf %19, %20 : vector<1x128xf32>
    %cst_10 = arith.constant 9.99999974E-6 : f32
    %22 = vector.broadcast %cst_10 : f32 to vector<1x128xf32>
    %23 = arith.addf %21, %22 : vector<1x128xf32>
    %24 = math.rsqrt %23 : vector<1x128xf32>
    %25 = arith.mulf %5, %24 : vector<1x128xf32>
    %26 = arith.mulf %14, %25 : vector<1x128xf32>
    %27 = arith.subf %6, %26 : vector<1x128xf32>
    %28 = vector.broadcast %25 : vector<1x128xf32> to vector<8x128xf32>
    %29 = arith.mulf %10, %28 : vector<8x128xf32>
    %30 = vector.broadcast %27 : vector<1x128xf32> to vector<8x128xf32>
    %31 = arith.addf %29, %30 : vector<8x128xf32>
    %cst_11 = arith.constant 0.000000e+00 : f32
    %32 = vector.broadcast %cst_11 : f32 to vector<8x128xf32>
    %33 = arith.cmpf ogt, %31, %32 : vector<8x128xf32>
    %cst_12 = arith.constant 2.000000e-01 : f32
    %34 = vector.broadcast %cst_12 : f32 to vector<8x128xf32>
    %35 = arith.mulf %34, %31 : vector<8x128xf32>
    %36 = arith.select %33, %31, %35 : vector<8x128xi1>, vector<8x128xf32>
    %cst_13 = arith.constant dense<0.000000e+00> : vector<8x128xf32>
    %37 = tpu.matmul %36, %2, %cst_13 {dimension_numbers = #tpu.dot_dimension_numbers<[1], [0], [0], [1], [0, 0, 1, 1], [], []>} : vector<8x128xf32>, vector<128x128xf32>, vector<8x128xf32> -> vector<8x128xf32>
    %cst_14 = arith.constant dense<0.000000e+00> : vector<128xf32>
    %38 = vector.multi_reduction <add>, %37, %cst_14 [0] : vector<8x128xf32> to vector<128xf32>
    %39 = vector.shape_cast %38 : vector<128xf32> to vector<1x128xf32>
    %cst_15 = arith.constant 8.000000e+00 : f32
    %40 = vector.broadcast %cst_15 : f32 to vector<1x128xf32>
    %41 = arith.divf %39, %40 : vector<1x128xf32>
    %42 = vector.broadcast %41 : vector<1x128xf32> to vector<8x128xf32>
    %43 = arith.subf %37, %42 : vector<8x128xf32>
    %44 = arith.mulf %43, %43 : vector<8x128xf32>
    %cst_16 = arith.constant dense<0.000000e+00> : vector<128xf32>
    %45 = vector.multi_reduction <add>, %44, %cst_16 [0] : vector<8x128xf32> to vector<128xf32>
    %46 = vector.shape_cast %45 : vector<128xf32> to vector<1x128xf32>
    %cst_17 = arith.constant 8.000000e+00 : f32
    %47 = vector.broadcast %cst_17 : f32 to vector<1x128xf32>
    %48 = arith.divf %46, %47 : vector<1x128xf32>
    %cst_18 = arith.constant 9.99999974E-6 : f32
    %49 = vector.broadcast %cst_18 : f32 to vector<1x128xf32>
    %50 = arith.addf %48, %49 : vector<1x128xf32>
    %51 = math.rsqrt %50 : vector<1x128xf32>
    %52 = arith.mulf %7, %51 : vector<1x128xf32>
    %53 = arith.mulf %41, %52 : vector<1x128xf32>
    %54 = arith.subf %8, %53 : vector<1x128xf32>
    %55 = vector.broadcast %52 : vector<1x128xf32> to vector<8x128xf32>
    %56 = arith.mulf %37, %55 : vector<8x128xf32>
    %57 = vector.broadcast %54 : vector<1x128xf32> to vector<8x128xf32>
    %58 = arith.addf %56, %57 : vector<8x128xf32>
    %cst_19 = arith.constant 0.000000e+00 : f32
    %59 = vector.broadcast %cst_19 : f32 to vector<8x128xf32>
    %60 = arith.cmpf ogt, %58, %59 : vector<8x128xf32>
    %cst_20 = arith.constant 2.000000e-01 : f32
    %61 = vector.broadcast %cst_20 : f32 to vector<8x128xf32>
    %62 = arith.mulf %61, %58 : vector<8x128xf32>
    %63 = arith.select %60, %58, %62 : vector<8x128xi1>, vector<8x128xf32>
    %cst_21 = arith.constant dense<0.000000e+00> : vector<8x128xf32>
    %64 = tpu.matmul %63, %3, %cst_21 {dimension_numbers = #tpu.dot_dimension_numbers<[1], [0], [0], [1], [0, 0, 1, 1], [], []>} : vector<8x128xf32>, vector<128x128xf32>, vector<8x128xf32> -> vector<8x128xf32>
    %65 = vector.broadcast %9 : vector<1x128xf32> to vector<8x128xf32>
    %66 = arith.addf %64, %65 : vector<8x128xf32>
    %67 = arith.negf %66 : vector<8x128xf32>
    %68 = math.exp %67 : vector<8x128xf32>
    %cst_22 = arith.constant 1.000000e+00 : f32
    %69 = vector.broadcast %cst_22 : f32 to vector<8x128xf32>
    %70 = arith.addf %69, %68 : vector<8x128xf32>
    %71 = arith.divf %69, %70 : vector<8x128xf32>
    %c0_23 = arith.constant 0 : index
    %c0_24 = arith.constant 0 : index
    %72 = vector.load %arg2[%c0_23, %c0_24] : memref<8x128xf32, #tpu.memory_space<vmem>>, vector<8x128xf32>
    tpu.vector_store %arg2[%c0_23, %c0_24], %71 {strides = array<i32>} : memref<8x128xf32, #tpu.memory_space<vmem>>, vector<8x128xf32>,
    return
  }
}

</mosaic_0001>

<llo_original>
// kernel: tpu_custom_call.1
$region0: #{tpu_custom_call.1}
  #allocation0 [shape = 'u32[]', space=smem, size = 0x4, offset = 0x4, fixed_abs, tag = 'smem constant byte address 0x4 - core index']
  #allocation1 [shape = 'u32[144,128]{1,0:T(1,128)}', space=vmem, size = 0x12000, scoped, tag = 'internal scratch']
  %s0 = inlined_call_operand.hbm [shape: f32[8,128], index: 0, kind: input, shape index: {}]
  %s1 = inlined_call_operand.hbm [shape: f32[392,128], index: 1, kind: input, shape index: {}]
  %s2 = inlined_call_operand.hbm [shape: f32[8,128], index: 2, kind: output, shape index: {}]
  %s3 = sld [smem:[#allocation0]]
  $region26: #{tpu_custom_call.1} parent=0
    _
  %s5 = ssub.s32 1, %s3
  %s6 = scalar_select 0, %s5, %s3
  $region1: #{tpu_custom_call.1} parent=0
    #allocation2 [shape = 'u8[4096]{0}', space=vmem, size = 0x1000, scoped, tag = 'input window, operand 0, single buffered']
    #allocation3 [shape = 's32[1]{0}', space=sflag, size = 0x4, scoped, tag = 'scoped memory for tpu_custom_call.1']
    #allocation4 [shape = 's32[1]{0}', space=sflag, size = 0x4, scoped, tag = 'scoped memory for tpu_custom_call.1']
    #allocation5 [shape = 'u8[200704]{0}', space=vmem, size = 0x31000, scoped, tag = 'input window, operand 1, single buffered']
    #allocation6 [shape = 's32[1]{0}', space=sflag, size = 0x4, scoped, tag = 'scoped memory for tpu_custom_call.1']
    #allocation7 [shape = 'u8[4096]{0}', space=vmem, size = 0x1000, scoped, tag = 'output window, operand 0, single buffered']
    %7 = vsyncpa [#allocation3], 0
    %8 = vsyncpa [#allocation6], 0
    %9 = vsyncpa [#allocation4], 0
    // Predicated region
    $region2: #{tpu_custom_call.1} parent=1 // pred_check
      _
    $region3: #{tpu_custom_call.1} parent=1 // pred_check_branch
      %11 = sbr.rel (0) target = $region5
    $region4: #{tpu_custom_call.1} parent=1 // pred_region
      %s13 = ssub.s32 128, 128
      %14 = vsyncadd [#allocation3], %s13
      %s16 = sshll.u32 [#allocation2], 4
      %s17 = int_to_ptr.vmem [resolvable:$true] %s16
      %19 = dma.hbm_to_vmem [thread:$0]  %s0, 128, %s17, [#allocation3]
    $region5: #{tpu_custom_call.1} parent=1 // pred_fallthru
      _
    // Predicated region
    $region6: #{tpu_custom_call.1} parent=1 // pred_check
      _
    $region7: #{tpu_custom_call.1} parent=1 // pred_check_branch
      %21 = sbr.rel (0) target = $region9
    $region8: #{tpu_custom_call.1} parent=1 // pred_region
      %s23 = ssub.s32 6272, 6272
      %24 = vsyncadd [#allocation6], %s23
      %s25 = sshll.u32 [#allocation5], 4
      %s26 = int_to_ptr.vmem [resolvable:$true] %s25
      %31 = dma.hbm_to_vmem [thread:$0]  %s1, 6272, %s26, [#allocation6], 128, 128, 8
    $region9: #{tpu_custom_call.1} parent=1 // pred_fallthru
      _
    // Predicated region
    $region10: #{tpu_custom_call.1} parent=1 // pred_check
      _
    $region11: #{tpu_custom_call.1} parent=1 // pred_check_branch
      %33 = sbr.rel (0) target = $region13
    $region12: #{tpu_custom_call.1} parent=1 // pred_region
      %34 = dma.done [#allocation3], 128
    $region13: #{tpu_custom_call.1} parent=1 // pred_fallthru
      _
    // Predicated region
    $region14: #{tpu_custom_call.1} parent=1 // pred_check
      _
    $region15: #{tpu_custom_call.1} parent=1 // pred_check_branch
      %36 = sbr.rel (0) target = $region17
    $region16: #{tpu_custom_call.1} parent=1 // pred_region
      %37 = dma.done [#allocation6], 6272
    $region17: #{tpu_custom_call.1} parent=1 // pred_fallthru
      _
    %v38 = vld [vmem:[#allocation2] sm:$0xff]
    %v39 = vld [vmem:[#allocation5] sm:$0xff]
    %v40 = vld [vmem:[#allocation5 + $0x8] sm:$0xff]
    %v41 = vld [vmem:[#allocation5 + $0x10] sm:$0xff]
    %v42 = vld [vmem:[#allocation5 + $0x18] sm:$0xff]
    %v43 = vld [vmem:[#allocation5 + $0x20] sm:$0xff]
    %v44 = vld [vmem:[#allocation5 + $0x28] sm:$0xff]
    %v45 = vld [vmem:[#allocation5 + $0x30] sm:$0xff]
    %v46 = vld [vmem:[#allocation5 + $0x38] sm:$0xff]
    %v47 = vld [vmem:[#allocation5 + $0x40] sm:$0xff]
    %v48 = vld [vmem:[#allocation5 + $0x48] sm:$0xff]
    %v49 = vld [vmem:[#allocation5 + $0x50] sm:$0xff]
    %v50 = vld [vmem:[#allocation5 + $0x58] sm:$0xff]
    %v51 = vld [vmem:[#allocation5 + $0x60] sm:$0xff]
    %v52 = vld [vmem:[#allocation5 + $0x68] sm:$0xff]
    %v53 = vld [vmem:[#allocation5 + $0x70] sm:$0xff]
    %v54 = vld [vmem:[#allocation5 + $0x78] sm:$0xff]
    %v55 = vld [vmem:[#allocation5 + $0x80] sm:$0xff]
    %v56 = vld [vmem:[#allocation5 + $0x88] sm:$0xff]
    %v57 = vld [vmem:[#allocation5 + $0x90] sm:$0xff]
    %v58 = vld [vmem:[#allocation5 + $0x98] sm:$0xff]
    %v59 = vld [vmem:[#allocation5 + $0xa0] sm:$0xff]
    %v60 = vld [vmem:[#allocation5 + $0xa8] sm:$0xff]
    %v61 = vld [vmem:[#allocation5 + $0xb0] sm:$0xff]
    %v62 = vld [vmem:[#allocation5 + $0xb8] sm:$0xff]
    %v63 = vld [vmem:[#allocation5 + $0xc0] sm:$0xff]
    %v64 = vld [vmem:[#allocation5 + $0xc8] sm:$0xff]
    %v65 = vld [vmem:[#allocation5 + $0xd0] sm:$0xff]
    %v66 = vld [vmem:[#allocation5 + $0xd8] sm:$0xff]
    %v67 = vld [vmem:[#allocation5 + $0xe0] sm:$0xff]
    %v68 = vld [vmem:[#allocation5 + $0xe8] sm:$0xff]
    %v69 = vld [vmem:[#allocation5 + $0xf0] sm:$0xff]
    %v70 = vld [vmem:[#allocation5 + $0xf8] sm:$0xff]
    %v71 = vld [vmem:[#allocation5 + $0x100] sm:$0xff]
    %v72 = vld [vmem:[#allocation5 + $0x108] sm:$0xff]
    %v73 = vld [vmem:[#allocation5 + $0x110] sm:$0xff]
    %v74 = vld [vmem:[#allocation5 + $0x118] sm:$0xff]
    %v75 = vld [vmem:[#allocation5 + $0x120] sm:$0xff]
    %v76 = vld [vmem:[#allocation5 + $0x128] sm:$0xff]
    %v77 = vld [vmem:[#allocation5 + $0x130] sm:$0xff]
    %v78 = vld [vmem:[#allocation5 + $0x138] sm:$0xff]
    %v79 = vld [vmem:[#allocation5 + $0x140] sm:$0xff]
    %v80 = vld [vmem:[#allocation5 + $0x148] sm:$0xff]
    %v81 = vld [vmem:[#allocation5 + $0x150] sm:$0xff]
    %v82 = vld [vmem:[#allocation5 + $0x158] sm:$0xff]
    %v83 = vld [vmem:[#allocation5 + $0x160] sm:$0xff]
    %v84 = vld [vmem:[#allocation5 + $0x168] sm:$0xff]
    %v85 = vld [vmem:[#allocation5 + $0x170] sm:$0xff]
    %v86 = vld [vmem:[#allocation5 + $0x178] sm:$0xff]
    %v87 = vld [vmem:[#allocation5 + $0x180] sm:$0xff]
    %88 = vmatprep.subr.mxu0 0.0
    %89 = vmatpush1.msra.mxu0 %v54
    %90 = vmatprep.subr.mxu0 0.0
    %91 = vmatpush1.msra.mxu0 %v53
    %92 = vmatprep.subr.mxu0 0.0
    %93 = vmatpush1.msra.mxu0 %v52
    %94 = vmatprep.subr.mxu0 0.0
    %95 = vmatpush1.msra.mxu0 %v51
    %96 = vmatprep.subr.mxu0 0.0
    %97 = vmatpush1.msra.mxu0 %v50
    %98 = vmatprep.subr.mxu0 0.0
    %99 = vmatpush1.msra.mxu0 %v49
    %100 = vmatprep.subr.mxu0 0.0
    %101 = vmatpush1.msra.mxu0 %v48
    %102 = vmatprep.subr.mxu0 0.0
    %103 = vmatpush1.msra.mxu0 %v47
    %104 = vmatprep.subr.mxu0 0.0
    %105 = vmatpush1.msra.mxu0 %v46
    %106 = vmatprep.subr.mxu0 0.0
    %107 = vmatpush1.msra.mxu0 %v45
    %108 = vmatprep.subr.mxu0 0.0
    %109 = vmatpush1.msra.mxu0 %v44
    %110 = vmatprep.subr.mxu0 0.0
    %111 = vmatpush1.msra.mxu0 %v43
    %112 = vmatprep.subr.mxu0 0.0
    %113 = vmatpush1.msra.mxu0 %v42
    %114 = vmatprep.subr.mxu0 0.0
    %115 = vmatpush1.msra.mxu0 %v41
    %116 = vmatprep.subr.mxu0 0.0
    %117 = vmatpush1.msra.mxu0 %v40
    %118 = vmatprep.subr.mxu0 0.0
    %119 = vmatpush1.msra.mxu0 %v39
    %120 = vmatprep.subr.mxu0 0.0
    %121 = vmatpush2.msra.mxu0 0.0
    %122 = vmatprep.subr.mxu0 0.0
    %123 = vmatpush2.msra.mxu0 0.0
    %124 = vmatprep.subr.mxu0 0.0
    %125 = vmatpush2.msra.mxu0 0.0
    %126 = vmatprep.subr.mxu0 0.0
    %127 = vmatpush2.msra.mxu0 0.0
    %128 = vmatprep.subr.mxu0 0.0
    %129 = vmatpush2.msra.mxu0 0.0
    %130 = vmatprep.subr.mxu0 0.0
    %131 = vmatpush2.msra.mxu0 0.0
    %132 = vmatprep.subr.mxu0 0.0
    %133 = vmatpush2.msra.mxu0 0.0
    %134 = vmatprep.subr.mxu0 0.0
    %135 = vmatpush2.msra.mxu0 0.0
    %136 = vmatprep.subr.mxu0 0.0
    %137 = vmatpush2.msra.mxu0 0.0
    %138 = vmatprep.subr.mxu0 0.0
    %139 = vmatpush2.msra.mxu0 0.0
    %140 = vmatprep.subr.mxu0 0.0
    %141 = vmatpush2.msra.mxu0 0.0
    %142 = vmatprep.subr.mxu0 0.0
    %143 = vmatpush2.msra.mxu0 0.0
    %144 = vmatprep.subr.mxu0 0.0
    %145 = vmatpush2.msra.mxu0 0.0
    %146 = vmatprep.subr.mxu0 0.0
    %147 = vmatpush2.msra.mxu0 0.0
    %148 = vmatprep.subr.mxu0 0.0
    %149 = vmatpush2.msra.mxu0 0.0
    %150 = vmatprep.subr.mxu0 0.0
    %151 = vmatpush2.msra.mxu0 0.0
    %152 = vmatprep.mubr.f32.mxu0 0.0
    %153 = vmatmul.mubr.f32.gmra.mxu0 %v38
    %v154 = vpop.f32.mrf.mxu0
    %v155 = vadd.f32 0.0, %v154
    %v156 = vpop.f32.mrf.mxu0
    %157 = vdwg.mxu0
    %v158 = vrot.slane %v155, 4
    %v159 = vadd.f32 %v155, %v158
    %v160 = vrot.slane %v159, 2
    %v161 = vadd.f32 %v159, %v160
    %v162 = vrot.slane %v161, 1
    %v163 = vadd.f32 %v161, %v162
    %v164 = vrcp.pop 8.0
    %v165 = vmul.f32 %v163, %v164
    %v166 = vsub.f32 %v155, %v165
    %v167 = vmul.f32 %v166, %v166
    %v168 = vrot.slane %v167, 4
    %v169 = vadd.f32 %v167, %v168
    %v170 = vrot.slane %v169, 2
    %v171 = vadd.f32 %v169, %v170
    %v172 = vrot.slane %v171, 1
    %v173 = vadd.f32 %v171, %v172
    %v174 = vmul.f32 %v173, %v164
    %v175 = vadd.f32 %v174, 1e-05
    %v176 = vrsqrt.pop %v175
    %v177 = vmul.f32 %v87, %v176
    %v178 = vmul.f32 %v165, %v177
    %v180 = vrot.slane %v178, 7
    %v182 = vsub.f32 %v87, %v180
    %v183 = vlaneseq
    %v184 = vshrl.u32 %v183, 7
    %v185 = vsub.s32 0, %v184
    %v186 = vrot.slane %v177, %v185
    %v187 = vmul.f32 %v155, %v186
    %v188 = vlaneseq
    %v189 = vshrl.u32 %v188, 7
    %v190 = vsub.s32 1, %v189
    %v191 = vrot.slane %v182, %v190
    %v192 = vadd.f32 %v187, %v191
    %vm193 = vcmp.gt.f32.partialorder %v192, 0.0
    %v194 = vmul.f32 %v192, 0.2
    %v195 = vsel %vm193, %v192, %v194
    %196 = vmatprep.subr.mxu0 0.0
    %197 = vmatpush1.msra.mxu0 %v70
    %198 = vmatprep.subr.mxu0 0.0
    %199 = vmatpush1.msra.mxu0 %v69
    %200 = vmatprep.subr.mxu0 0.0
    %201 = vmatpush1.msra.mxu0 %v68
    %202 = vmatprep.subr.mxu0 0.0
    %203 = vmatpush1.msra.mxu0 %v67
    %204 = vmatprep.subr.mxu0 0.0
    %205 = vmatpush1.msra.mxu0 %v66
    %206 = vmatprep.subr.mxu0 0.0
    %207 = vmatpush1.msra.mxu0 %v65
    %208 = vmatprep.subr.mxu0 0.0
    %209 = vmatpush1.msra.mxu0 %v64
    %210 = vmatprep.subr.mxu0 0.0
    %211 = vmatpush1.msra.mxu0 %v63
    %212 = vmatprep.subr.mxu0 0.0
    %213 = vmatpush1.msra.mxu0 %v62
    %214 = vmatprep.subr.mxu0 0.0
    %215 = vmatpush1.msra.mxu0 %v61
    %216 = vmatprep.subr.mxu0 0.0
    %217 = vmatpush1.msra.mxu0 %v60
    %218 = vmatprep.subr.mxu0 0.0
    %219 = vmatpush1.msra.mxu0 %v59
    %220 = vmatprep.subr.mxu0 0.0
    %221 = vmatpush1.msra.mxu0 %v58
    %222 = vmatprep.subr.mxu0 0.0
    %223 = vmatpush1.msra.mxu0 %v57
    %224 = vmatprep.subr.mxu0 0.0
    %225 = vmatpush1.msra.mxu0 %v56
    %226 = vmatprep.subr.mxu0 0.0
    %227 = vmatpush1.msra.mxu0 %v55
    %228 = vmatprep.subr.mxu0 0.0
    %229 = vmatpush2.msra.mxu0 0.0
    %230 = vmatprep.subr.mxu0 0.0
    %231 = vmatpush2.msra.mxu0 0.0
    %232 = vmatprep.subr.mxu0 0.0
    %233 = vmatpush2.msra.mxu0 0.0
    %234 = vmatprep.subr.mxu0 0.0
    %235 = vmatpush2.msra.mxu0 0.0
    %236 = vmatprep.subr.mxu0 0.0
    %237 = vmatpush2.msra.mxu0 0.0
    %238 = vmatprep.subr.mxu0 0.0
    %239 = vmatpush2.msra.mxu0 0.0
    %240 = vmatprep.subr.mxu0 0.0
    %241 = vmatpush2.msra.mxu0 0.0
    %242 = vmatprep.subr.mxu0 0.0
    %243 = vmatpush2.msra.mxu0 0.0
    %244 = vmatprep.subr.mxu0 0.0
    %245 = vmatpush2.msra.mxu0 0.0
    %246 = vmatprep.subr.mxu0 0.0
    %247 = vmatpush2.msra.mxu0 0.0
    %248 = vmatprep.subr.mxu0 0.0
    %249 = vmatpush2.msra.mxu0 0.0
    %250 = vmatprep.subr.mxu0 0.0
    %251 = vmatpush2.msra.mxu0 0.0
    %252 = vmatprep.subr.mxu0 0.0
    %253 = vmatpush2.msra.mxu0 0.0
    %254 = vmatprep.subr.mxu0 0.0
    %255 = vmatpush2.msra.mxu0 0.0
    %256 = vmatprep.subr.mxu0 0.0
    %257 = vmatpush2.msra.mxu0 0.0
    %258 = vmatprep.subr.mxu0 0.0
    %259 = vmatpush2.msra.mxu0 0.0
    %260 = vmatprep.mubr.f32.mxu0 0.0
    %261 = vmatmul.mubr.f32.gmra.mxu0 %v195
    %v262 = vpop.f32.mrf.mxu0
    %v263 = vadd.f32 0.0, %v262
    %v264 = vpop.f32.mrf.mxu0
    %265 = vdwg.mxu0
    %v266 = vrot.slane %v263, 4
    %v267 = vadd.f32 %v263, %v266
    %v268 = vrot.slane %v267, 2
    %v269 = vadd.f32 %v267, %v268
    %v270 = vrot.slane %v269, 1
    %v271 = vadd.f32 %v269, %v270
    %v272 = vmul.f32 %v271, %v164
    %v273 = vsub.f32 %v263, %v272
    %v274 = vmul.f32 %v273, %v273
    %v275 = vrot.slane %v274, 4
    %v276 = vadd.f32 %v274, %v275
    %v277 = vrot.slane %v276, 2
    %v278 = vadd.f32 %v276, %v277
    %v279 = vrot.slane %v278, 1
    %v280 = vadd.f32 %v278, %v279
    %v281 = vmul.f32 %v280, %v164
    %v282 = vadd.f32 %v281, 1e-05
    %v283 = vrsqrt.pop %v282
    %v284 = vmul.f32 %v87, %v283
    %v285 = vmul.f32 %v272, %v284
    %v287 = vrot.slane %v285, 7
    %v289 = vsub.f32 %v87, %v287
    %v290 = vlaneseq
    %v291 = vshrl.u32 %v290, 7
    %v292 = vsub.s32 2, %v291
    %v293 = vrot.slane %v284, %v292
    %v294 = vmul.f32 %v263, %v293
    %v295 = vlaneseq
    %v296 = vshrl.u32 %v295, 7
    %v297 = vsub.s32 3, %v296
    %v298 = vrot.slane %v289, %v297
    %v299 = vadd.f32 %v294, %v298
    %vm300 = vcmp.gt.f32.partialorder %v299, 0.0
    %v301 = vmul.f32 %v299, 0.2
    %v302 = vsel %vm300, %v299, %v301
    %v303 = vlaneseq
    %v304 = vshrl.u32 %v303, 7
    %v305 = vsub.s32 4, %v304
    %v306 = vrot.slane %v87, %v305
    %307 = vmatprep.subr.mxu0 0.0
    %308 = vmatpush1.msra.mxu0 %v86
    %309 = vmatprep.subr.mxu0 0.0
    %310 = vmatpush1.msra.mxu0 %v85
    %311 = vmatprep.subr.mxu0 0.0
    %312 = vmatpush1.msra.mxu0 %v84
    %313 = vmatprep.subr.mxu0 0.0
    %314 = vmatpush1.msra.mxu0 %v83
    %315 = vmatprep.subr.mxu0 0.0
    %316 = vmatpush1.msra.mxu0 %v82
    %317 = vmatprep.subr.mxu0 0.0
    %318 = vmatpush1.msra.mxu0 %v81
    %319 = vmatprep.subr.mxu0 0.0
    %320 = vmatpush1.msra.mxu0 %v80
    %321 = vmatprep.subr.mxu0 0.0
    %322 = vmatpush1.msra.mxu0 %v79
    %323 = vmatprep.subr.mxu0 0.0
    %324 = vmatpush1.msra.mxu0 %v78
    %325 = vmatprep.subr.mxu0 0.0
    %326 = vmatpush1.msra.mxu0 %v77
    %327 = vmatprep.subr.mxu0 0.0
    %328 = vmatpush1.msra.mxu0 %v76
    %329 = vmatprep.subr.mxu0 0.0
    %330 = vmatpush1.msra.mxu0 %v75
    %331 = vmatprep.subr.mxu0 0.0
    %332 = vmatpush1.msra.mxu0 %v74
    %333 = vmatprep.subr.mxu0 0.0
    %334 = vmatpush1.msra.mxu0 %v73
    %335 = vmatprep.subr.mxu0 0.0
    %336 = vmatpush1.msra.mxu0 %v72
    %337 = vmatprep.subr.mxu0 0.0
    %338 = vmatpush1.msra.mxu0 %v71
    %339 = vmatprep.subr.mxu0 0.0
    %340 = vmatpush2.msra.mxu0 0.0
    %341 = vmatprep.subr.mxu0 0.0
    %342 = vmatpush2.msra.mxu0 0.0
    %343 = vmatprep.subr.mxu0 0.0
    %344 = vmatpush2.msra.mxu0 0.0
    %345 = vmatprep.subr.mxu0 0.0
    %346 = vmatpush2.msra.mxu0 0.0
    %347 = vmatprep.subr.mxu0 0.0
    %348 = vmatpush2.msra.mxu0 0.0
    %349 = vmatprep.subr.mxu0 0.0
    %350 = vmatpush2.msra.mxu0 0.0
    %351 = vmatprep.subr.mxu0 0.0
    %352 = vmatpush2.msra.mxu0 0.0
    %353 = vmatprep.subr.mxu0 0.0
    %354 = vmatpush2.msra.mxu0 0.0
    %355 = vmatprep.subr.mxu0 0.0
    %356 = vmatpush2.msra.mxu0 0.0
    %357 = vmatprep.subr.mxu0 0.0
    %358 = vmatpush2.msra.mxu0 0.0
    %359 = vmatprep.subr.mxu0 0.0
    %360 = vmatpush2.msra.mxu0 0.0
    %361 = vmatprep.subr.mxu0 0.0
    %362 = vmatpush2.msra.mxu0 0.0
    %363 = vmatprep.subr.mxu0 0.0
    %364 = vmatpush2.msra.mxu0 0.0
    %365 = vmatprep.subr.mxu0 0.0
    %366 = vmatpush2.msra.mxu0 0.0
    %367 = vmatprep.subr.mxu0 0.0
    %368 = vmatpush2.msra.mxu0 0.0
    %369 = vmatprep.subr.mxu0 0.0
    %370 = vmatpush2.msra.mxu0 0.0
    %371 = vmatprep.mubr.f32.mxu0 0.0
    %372 = vmatmul.mubr.f32.gmra.mxu0 %v302
    %v373 = vpop.f32.mrf.mxu0
    %v374 = vadd.f32 %v306, %v373
    %v375 = vpop.f32.mrf.mxu0
    %376 = vdwg.mxu0
    %v377 = vxor.u32 %v374, 2147483648
    %v378 = vmul.f32 %v377, 1.442695
    %v379 = vpow.pop %v378
    %v380 = vadd.f32 %v379, 1.0
    %v381 = vrcp.pop %v380
    %v382 = vmul.f32 1.0, %v381
    %383 = vst [vmem:[#allocation7] sm:$0xff] %v382
    // Predicated region
    $region18: #{tpu_custom_call.1} parent=1 // pred_check
      _
    $region19: #{tpu_custom_call.1} parent=1 // pred_check_branch
      %385 = sbr.rel (0) target = $region21
    $region20: #{tpu_custom_call.1} parent=1 // pred_region
      %s387 = ssub.s32 128, 128
      %388 = vsyncadd [#allocation4], %s387
      %s390 = sshll.u32 [#allocation7], 4
      %s391 = int_to_ptr.vmem [resolvable:$true] %s390
      %393 = dma.vmem_to_hbm [thread:$0]  %s391, 128, %s2, [#allocation4]
    $region21: #{tpu_custom_call.1} parent=1 // pred_fallthru
      _
    // Predicated region
    $region22: #{tpu_custom_call.1} parent=1 // pred_check
      _
    $region23: #{tpu_custom_call.1} parent=1 // pred_check_branch
      %395 = sbr.rel (0) target = $region25
    $region24: #{tpu_custom_call.1} parent=1 // pred_region
      %396 = dma.done [#allocation4], 128
    $region25: #{tpu_custom_call.1} parent=1 // pred_fallthru
      _
    %397 = vsyncpa [#allocation3], 1
    %398 = vsyncpa [#allocation6], 1
    %399 = vsyncpa [#allocation4], 1

</llo_original>
